<compile_context>
chip_gen: v5e
topology: v5e:2x2
jax: 0.10.0
libtpu: 0.0.40
codegen_flags: <defaults>
</compile_context>

<pallas_src>
import jax
import jax.numpy as jnp
from jax.experimental import pallas as pl
from jax.experimental.pallas import tpu as pltpu

LANE = 128
TARGET_BLOCK_BYTES = 4 * 1024 * 1024  # ~4 MiB per input per grid step


def _cdiv(a, b):
    return -(-a // b)


def _round_up(a, b):
    return _cdiv(a, b) * b


def _make_kernel(block_rows, n_valid):
    """Kernel computing per-split partial sums of (t - p)^2 into an (8, LANE) block."""
    block_elems = block_rows * LANE

    def kernel(p_ref, t_ref, o_ref):
        step = pl.program_id(1)

        @pl.when(step == 0)
        def _():
            o_ref[...] = jnp.zeros_like(o_ref)

        p = p_ref[...].astype(jnp.float32)
        t = t_ref[...].astype(jnp.float32)
        err = t - p
        sq = err * err

        # Logical (unclamped) block index -> global flat element offset.
        block_idx = pl.program_id(0) * pl.num_programs(1) + step
        block_start = block_idx * block_elems

        # Fast path: block entirely inside the valid element range.
        @pl.when(block_start + block_elems <= n_valid)
        def _():
            o_ref[...] += jnp.sum(sq.reshape(block_rows // 8, 8, LANE), axis=0)

        # Slow path: final partial block / dead split step -> mask by flat index.
        @pl.when(block_start + block_elems > n_valid)
        def _():
            row = jax.lax.broadcasted_iota(jnp.int32, (block_rows, LANE), 0)
            lane = jax.lax.broadcasted_iota(jnp.int32, (block_rows, LANE), 1)
            flat = block_start + row * LANE + lane
            sqm = jnp.where(flat < n_valid, sq, jnp.float32(0.0))
            o_ref[...] += jnp.sum(sqm.reshape(block_rows // 8, 8, LANE), axis=0)

    return kernel


def _sq_err_sum_pallas(p2, t2, n, block_rows, num_splits, steps, total_blocks):
    """Sum of (t - p)^2 over the first n flat elements of the (rows, LANE) slabs."""
    kernel = _make_kernel(block_rows, n)
    itemsize = jnp.dtype(p2.dtype).itemsize

    # Clamp so a dead step (odd block count split 2 ways) re-reads a valid block;
    # its contribution is zeroed by the in-kernel mask.
    def in_idx(s, i):
        return (jnp.minimum(s * steps + i, total_blocks - 1), 0)

    partials = pl.pallas_call(
        kernel,
        out_shape=jax.ShapeDtypeStruct((num_splits * 8, LANE), jnp.float32),
        grid_spec=pltpu.PrefetchScalarGridSpec(
            num_scalar_prefetch=0,
            grid=(num_splits, steps),
            in_specs=[
                pl.BlockSpec((block_rows, LANE), in_idx),
                pl.BlockSpec((block_rows, LANE), in_idx),
            ],
            out_specs=pl.BlockSpec((8, LANE), lambda s, i: (s, 0)),
        ),
        compiler_params=pltpu.CompilerParams(
            dimension_semantics=("parallel", "arbitrary"),
            vmem_limit_bytes=40 * 1024 * 1024,
        ),
        cost_estimate=pl.CostEstimate(
            flops=3 * n,
            transcendentals=0,
            bytes_accessed=2 * n * itemsize + num_splits * 8 * LANE * 4,
        ),
    )(p2, t2)
    return jnp.sum(partials)


def bce_loss(pred, target):
    """Pallas equivalent of BCELoss.forward (weighted MSE, despite the name)."""
    if pred.shape[1] == 1:
        target = target[:, 0:1, :, :]

    n = pred.size
    pf = pred.reshape(-1)    # native dtype; upcast to f32 happens in-kernel
    tf = target.reshape(-1)

    rows = _cdiv(n, LANE)
    padded = rows * LANE
    if padded != n:
        # TODO(synk): pad-to-lane is the only remaining pre-kernel copy; it only
        # triggers when n % 128 != 0 and the padded tail is masked in-kernel.
        pf = jnp.pad(pf, (0, padded - n))
        tf = jnp.pad(tf, (0, padded - n))
    p2 = pf.reshape(rows, LANE)
    t2 = tf.reshape(rows, LANE)

    # Dtype-scaled block size: ~4 MiB per input per step, aligned to the
    # sublane-packing multiple (8 for f32, 16 for bf16, 32 for 8-bit).
    itemsize = jnp.dtype(pred.dtype).itemsize
    sub = max(8, 32 // itemsize)
    max_rows = TARGET_BLOCK_BYTES // (LANE * itemsize)
    block_rows = min(max_rows, _round_up(rows, sub))

    total_blocks = _cdiv(rows, block_rows)
    # Split across 2 TensorCores (helps v7x; near-free elsewhere) whenever there
    # is more than one block; cdiv + in-kernel mask handles odd block counts.
    num_splits = 2 if total_blocks >= 2 else 1
    steps = _cdiv(total_blocks, num_splits)

    total = _sq_err_sum_pallas(p2, t2, n, block_rows, num_splits, steps, total_blocks)

    # weights = 10000, mean over the true element count
    return 10000.0 * total / n


if __name__ == "__main__":
    key = jax.random.PRNGKey(0)
    kp, kt = jax.random.split(key)

    # NCHW inputs, small shapes: batch=2, channels=4, spatial=16x16
    pred = jax.random.uniform(kp, (2, 4, 16, 16), dtype=jnp.float32)
    target = jax.random.uniform(kt, (2, 4, 16, 16), dtype=jnp.float32)
    loss = bce_loss(pred, target)
    jax.block_until_ready(loss)
    ref = 10000.0 * jnp.mean((target - pred) ** 2)
    assert jnp.allclose(loss, ref, rtol=1e-5, atol=1e-3), (loss, ref)

    # single-channel branch (pred C==1 -> target sliced)
    pred1 = jax.random.uniform(kp, (2, 1, 16, 16), dtype=jnp.float32)
    tgt1 = jax.random.uniform(kt, (2, 4, 16, 16), dtype=jnp.float32)
    loss1 = bce_loss(pred1, tgt1)
    jax.block_until_ready(loss1)
    ref1 = 10000.0 * jnp.mean((tgt1[:, 0:1] - pred1) ** 2)
    assert jnp.allclose(loss1, ref1, rtol=1e-5, atol=1e-3), (loss1, ref1)

    # non-128-divisible element count: exercises the tiny pad + in-kernel mask
    kp2, kt2 = jax.random.split(kt)
    pred2 = jax.random.uniform(kp2, (4, 3, 100, 100), dtype=jnp.float32)
    tgt2 = jax.random.uniform(kt2, (4, 3, 100, 100), dtype=jnp.float32)
    loss2 = bce_loss(pred2, tgt2)
    jax.block_until_ready(loss2)
    ref2 = 10000.0 * jnp.mean((tgt2 - pred2) ** 2)
    assert jnp.allclose(loss2, ref2, rtol=1e-4, atol=1e-2), (loss2, ref2)

    # multi-block + odd block count: exercises the 2-way split, the clamped
    # dead step, and the full-block fast path
    kp3, kt3 = jax.random.split(kt2)
    pred3 = jax.random.uniform(kp3, (3, 8, 320, 320), dtype=jnp.float32)
    tgt3 = jax.random.uniform(kt3, (3, 8, 320, 320), dtype=jnp.float32)
    loss3 = bce_loss(pred3, tgt3)
    jax.block_until_ready(loss3)
    ref3 = 10000.0 * jnp.mean((tgt3 - pred3) ** 2)
    assert jnp.allclose(loss3, ref3, rtol=1e-4, atol=1e-2), (loss3, ref3)

    print("KERNEL_OK")
</pallas_src>

<mosaic_0001>
module attributes {stable_mosaic.version = 11 : i64} {
  func.func @kernel(%arg0: i32, %arg1: i32, %arg2: memref<16x128xf32, #tpu.memory_space<vmem>>, %arg3: memref<16x128xf32, #tpu.memory_space<vmem>>, %arg4: memref<8x128xf32, #tpu.memory_space<vmem>>) attributes {dimension_semantics = [#tpu.dimension_semantics<parallel>, #tpu.dimension_semantics<arbitrary>], iteration_bounds = array<i64: 1, 1>, scalar_prefetch = 0 : i64, scratch_operands = 0 : i64, tpu.core_type = #tpu.core_type<tc>, window_params = [{transform_indices = @transform_0, window_bounds = array<i64: 16, 128>}, {transform_indices = @transform_1, window_bounds = array<i64: 16, 128>}, {transform_indices = @transform_2, window_bounds = array<i64: 8, 128>}]} {
    %c0_i32 = arith.constant 0 : i32
    %0 = arith.cmpi eq, %arg1, %c0_i32 : i32
    %1 = arith.extui %0 : i1 to i32
    %c0_i32_0 = arith.constant 0 : i32
    %2 = arith.cmpi ne, %1, %c0_i32_0 : i32
    scf.if %2 {
      %cst = arith.constant 0.000000e+00 : f32
      %18 = vector.broadcast %cst : f32 to vector<8x128xf32>
      %c0_10 = arith.constant 0 : index
      %c0_11 = arith.constant 0 : index
      %19 = vector.load %arg4[%c0_10, %c0_11] : memref<8x128xf32, #tpu.memory_space<vmem>>, vector<8x128xf32>
      tpu.vector_store %arg4[%c0_10, %c0_11], %18 {strides = array<i32>} : memref<8x128xf32, #tpu.memory_space<vmem>>, vector<8x128xf32>,
    } else {
    }
    %c0 = arith.constant 0 : index
    %c0_1 = arith.constant 0 : index
    %3 = vector.load %arg2[%c0, %c0_1] : memref<16x128xf32, #tpu.memory_space<vmem>>, vector<16x128xf32>
    %c0_2 = arith.constant 0 : index
    %c0_3 = arith.constant 0 : index
    %4 = vector.load %arg3[%c0_2, %c0_3] : memref<16x128xf32, #tpu.memory_space<vmem>>, vector<16x128xf32>
    %5 = arith.subf %4, %3 : vector<16x128xf32>
    %6 = arith.mulf %5, %5 : vector<16x128xf32>
    %c1_i32 = arith.constant 1 : i32
    %7 = arith.muli %arg0, %c1_i32 : i32
    %8 = arith.addi %7, %arg1 : i32
    %c2048_i32 = arith.constant 2048 : i32
    %9 = arith.muli %8, %c2048_i32 : i32
    %c2048_i32_4 = arith.constant 2048 : i32
    %10 = arith.addi %9, %c2048_i32_4 : i32
    %c2048_i32_5 = arith.constant 2048 : i32
    %11 = arith.cmpi sle, %10, %c2048_i32_5 : i32
    %12 = arith.extui %11 : i1 to i32
    %c0_i32_6 = arith.constant 0 : i32
    %13 = arith.cmpi ne, %12, %c0_i32_6 : i32
    scf.if %13 {
      %c0_10 = arith.constant 0 : index
      %c0_11 = arith.constant 0 : index
      %18 = vector.load %arg4[%c0_10, %c0_11] : memref<8x128xf32, #tpu.memory_space<vmem>>, vector<8x128xf32>
      %19 = vector.shape_cast %6 : vector<16x128xf32> to vector<2x8x128xf32>
      %cst = arith.constant dense<0.000000e+00> : vector<8x128xf32>
      %20 = vector.multi_reduction <add>, %19, %cst [0] : vector<2x8x128xf32> to vector<8x128xf32>
      %21 = arith.addf %18, %20 : vector<8x128xf32>
      %c0_12 = arith.constant 0 : index
      %c0_13 = arith.constant 0 : index
      %22 = vector.load %arg4[%c0_12, %c0_13] : memref<8x128xf32, #tpu.memory_space<vmem>>, vector<8x128xf32>
      tpu.vector_store %arg4[%c0_12, %c0_13], %21 {strides = array<i32>} : memref<8x128xf32, #tpu.memory_space<vmem>>, vector<8x128xf32>,
    } else {
    }
    %c2048_i32_7 = arith.constant 2048 : i32
    %14 = arith.addi %9, %c2048_i32_7 : i32
    %c2048_i32_8 = arith.constant 2048 : i32
    %15 = arith.cmpi sgt, %14, %c2048_i32_8 : i32
    %16 = arith.extui %15 : i1 to i32
    %c0_i32_9 = arith.constant 0 : i32
    %17 = arith.cmpi ne, %16, %c0_i32_9 : i32
    scf.if %17 {
      %18 = tpu.iota {dimensions = array<i32: 0>} : vector<16x128xi32>
      %19 = tpu.iota {dimensions = array<i32: 1>} : vector<16x128xi32>
      %c128_i32 = arith.constant 128 : i32
      %20 = vector.broadcast %c128_i32 : i32 to vector<16x128xi32>
      %21 = arith.muli %18, %20 : vector<16x128xi32>
      %22 = vector.broadcast %9 : i32 to vector<16x128xi32>
      %23 = arith.addi %22, %21 : vector<16x128xi32>
      %24 = arith.addi %23, %19 : vector<16x128xi32>
      %c2048_i32_10 = arith.constant 2048 : i32
      %25 = vector.broadcast %c2048_i32_10 : i32 to vector<16x128xi32>
      %26 = arith.cmpi slt, %24, %25 : vector<16x128xi32>
      %cst = arith.constant 0.000000e+00 : f32
      %27 = vector.broadcast %cst : f32 to vector<16x128xf32>
      %28 = arith.select %26, %6, %27 : vector<16x128xi1>, vector<16x128xf32>
      %c0_11 = arith.constant 0 : index
      %c0_12 = arith.constant 0 : index
      %29 = vector.load %arg4[%c0_11, %c0_12] : memref<8x128xf32, #tpu.memory_space<vmem>>, vector<8x128xf32>
      %30 = vector.shape_cast %28 : vector<16x128xf32> to vector<2x8x128xf32>
      %cst_13 = arith.constant dense<0.000000e+00> : vector<8x128xf32>
      %31 = vector.multi_reduction <add>, %30, %cst_13 [0] : vector<2x8x128xf32> to vector<8x128xf32>
      %32 = arith.addf %29, %31 : vector<8x128xf32>
      %c0_14 = arith.constant 0 : index
      %c0_15 = arith.constant 0 : index
      %33 = vector.load %arg4[%c0_14, %c0_15] : memref<8x128xf32, #tpu.memory_space<vmem>>, vector<8x128xf32>
      tpu.vector_store %arg4[%c0_14, %c0_15], %32 {strides = array<i32>} : memref<8x128xf32, #tpu.memory_space<vmem>>, vector<8x128xf32>,
    } else {
    }
    return
  }
  func.func @transform_0(%arg0: i32, %arg1: i32) -> (i32, i32) {
    %c1_i32 = arith.constant 1 : i32
    %0 = arith.muli %arg0, %c1_i32 : i32
    %1 = arith.addi %0, %arg1 : i32
    %c0_i32 = arith.constant 0 : i32
    %2 = arith.minsi %1, %c0_i32 : i32
    %c0_i32_0 = arith.constant 0 : i32
    %c0_i32_1 = arith.constant 0 : i32
    return %2, %c0_i32_0 : i32, i32
  }
  func.func @transform_1(%arg0: i32, %arg1: i32) -> (i32, i32) {
    %c1_i32 = arith.constant 1 : i32
    %0 = arith.muli %arg0, %c1_i32 : i32
    %1 = arith.addi %0, %arg1 : i32
    %c0_i32 = arith.constant 0 : i32
    %2 = arith.minsi %1, %c0_i32 : i32
    %c0_i32_0 = arith.constant 0 : i32
    %c0_i32_1 = arith.constant 0 : i32
    return %2, %c0_i32_0 : i32, i32
  }
  func.func @transform_2(%arg0: i32, %arg1: i32) -> (i32, i32) {
    %c0_i32 = arith.constant 0 : i32
    %c0_i32_0 = arith.constant 0 : i32
    return %arg0, %c0_i32 : i32, i32
  }
}

</mosaic_0001>

<llo_original>
// kernel: tpu_custom_call.1
$region0: #{tpu_custom_call.1}
  #allocation0 [shape = 'u32[]', space=smem, size = 0x4, offset = 0x4, fixed_abs, tag = 'smem constant byte address 0x4 - core index']
  #allocation1 [shape = 'u32[72,128]{1,0:T(1,128)}', space=vmem, size = 0x9000, scoped, tag = 'internal scratch']
  %s0 = inlined_call_operand.hbm [shape: f32[16,128], index: 0, kind: input, shape index: {}]
  %s1 = inlined_call_operand.hbm [shape: f32[16,128], index: 1, kind: input, shape index: {}]
  %s2 = inlined_call_operand.hbm [shape: f32[8,128], index: 2, kind: output, shape index: {}]
  %s3 = sld [smem:[#allocation0]]
  $region38: #{tpu_custom_call.1} parent=0
    _
  %s5 = ssub.s32 1, %s3
  %s6 = scalar_select 0, %s5, %s3
  $region1: #{tpu_custom_call.1} parent=0
    #allocation2 [shape = 'u8[8192]{0}', space=vmem, size = 0x2000, scoped, tag = 'input window, operand 0, single buffered']
    #allocation3 [shape = 's32[1]{0}', space=sflag, size = 0x4, scoped, tag = 'scoped memory for tpu_custom_call.1']
    #allocation4 [shape = 's32[1]{0}', space=sflag, size = 0x4, scoped, tag = 'scoped memory for tpu_custom_call.1']
    #allocation5 [shape = 'u8[8192]{0}', space=vmem, size = 0x2000, scoped, tag = 'input window, operand 1, single buffered']
    #allocation6 [shape = 's32[1]{0}', space=sflag, size = 0x4, scoped, tag = 'scoped memory for tpu_custom_call.1']
    #allocation7 [shape = 'u8[4096]{0}', space=vmem, size = 0x1000, scoped, tag = 'output window, operand 0, single buffered']
    %7 = vsyncpa [#allocation3], 0
    %8 = vsyncpa [#allocation6], 0
    %9 = vsyncpa [#allocation4], 0
    // Predicated region
    $region2: #{tpu_custom_call.1} parent=1 // pred_check
      _
    $region3: #{tpu_custom_call.1} parent=1 // pred_check_branch
      %11 = sbr.rel (0) target = $region5
    $region4: #{tpu_custom_call.1} parent=1 // pred_region
      %s12 = sadd.s32 0, 0
      %p13 = scmp.lt.s32.totalorder %s12, 0
      %s14 = scalar_select %p13, %s12, 0
      %s15 = smul.u32 2, %s14
      %17 = vsyncadd [#allocation3], 0
      %s18 = smul.addr %s15, 8
      %s19 = scalar_lea.hbm %s0, %s18
      %s20 = sshll.u32 %s19, 4
      %s21 = int_to_ptr.hbm [resolvable:$true] %s20
      %s22 = sshll.u32 [#allocation2], 4
      %s23 = int_to_ptr.vmem [resolvable:$true] %s22
      %28 = dma.hbm_to_vmem [thread:$0]  %s21, 256, %s23, [#allocation3], 128, 128, 8
    $region5: #{tpu_custom_call.1} parent=1 // pred_fallthru
      _
    // Predicated region
    $region6: #{tpu_custom_call.1} parent=1 // pred_check
      _
    $region7: #{tpu_custom_call.1} parent=1 // pred_check_branch
      %30 = sbr.rel (0) target = $region9
    $region8: #{tpu_custom_call.1} parent=1 // pred_region
      %s31 = sadd.s32 0, 0
      %p32 = scmp.lt.s32.totalorder %s31, 0
      %s33 = scalar_select %p32, %s31, 0
      %s34 = smul.u32 2, %s33
      %36 = vsyncadd [#allocation6], 0
      %s37 = smul.addr %s34, 8
      %s38 = scalar_lea.hbm %s1, %s37
      %s39 = sshll.u32 %s38, 4
      %s40 = int_to_ptr.hbm [resolvable:$true] %s39
      %s41 = sshll.u32 [#allocation5], 4
      %s42 = int_to_ptr.vmem [resolvable:$true] %s41
      %47 = dma.hbm_to_vmem [thread:$0]  %s40, 256, %s42, [#allocation6], 128, 128, 8
    $region9: #{tpu_custom_call.1} parent=1 // pred_fallthru
      _
    // Predicated region
    $region10: #{tpu_custom_call.1} parent=1 // pred_check
      _
    $region11: #{tpu_custom_call.1} parent=1 // pred_check_branch
      %49 = sbr.rel (0) target = $region13
    $region12: #{tpu_custom_call.1} parent=1 // pred_region
      %51 = dma.done [#allocation3], 256
    $region13: #{tpu_custom_call.1} parent=1 // pred_fallthru
      _
    // Predicated region
    $region14: #{tpu_custom_call.1} parent=1 // pred_check
      _
    $region15: #{tpu_custom_call.1} parent=1 // pred_check_branch
      %53 = sbr.rel (0) target = $region17
    $region16: #{tpu_custom_call.1} parent=1 // pred_region
      %55 = dma.done [#allocation6], 256
    $region17: #{tpu_custom_call.1} parent=1 // pred_fallthru
      _
    %s56 = sadd.s32 0, 0
    %p57 = scmp.lt.s32.totalorder %s56, 0
    %s58 = scalar_select %p57, %s56, 0
    %s59 = smul.u32 2, %s58
    %s60 = sadd.s32 0, 0
    %p61 = scmp.lt.s32.totalorder %s60, 0
    %s62 = scalar_select %p61, %s60, 0
    %s63 = smul.u32 2, %s62
    %p64 = scmp.eq.s32.totalorder 0, 0
    // Predicated region
    $region18: #{tpu_custom_call.1} parent=1 // pred_check
      %p65 = pneg %p64
    $region19: #{tpu_custom_call.1} parent=1 // pred_check_branch
      %67 = sbr.rel (%p65) target = $region21
    $region20: #{tpu_custom_call.1} parent=1 // pred_region
      %68 = vst [vmem:[#allocation7] sm:$0xff] 0.0
    $region21: #{tpu_custom_call.1} parent=1 // pred_fallthru
      _
    %v69 = vld [vmem:[#allocation2] sm:$0xff]
    %v70 = vld [vmem:[#allocation2 + $0x8] sm:$0xff]
    %v71 = vld [vmem:[#allocation5] sm:$0xff]
    %v72 = vld [vmem:[#allocation5 + $0x8] sm:$0xff]
    %v73 = vsub.f32 %v71, %v69
    %v74 = vsub.f32 %v72, %v70
    %v75 = vmul.f32 %v73, %v73
    %v76 = vmul.f32 %v74, %v74
    %s77 = sadd.s32 0, 0
    %s78 = smul.u32 %s77, 2048
    %s79 = sadd.s32 %s78, 2048
    %p80 = scmp.le.s32.totalorder %s79, 2048
    // Predicated region
    $region22: #{tpu_custom_call.1} parent=1 // pred_check
      %p81 = pneg %p80
    $region23: #{tpu_custom_call.1} parent=1 // pred_check_branch
      %83 = sbr.rel (%p81) target = $region25
    $region24: #{tpu_custom_call.1} parent=1 // pred_region
      %v84 = vld [vmem:[#allocation7] sm:$0xff]
      %v85 = vadd.f32 %v75, %v76
      %v86 = vadd.f32 %v84, %v85
      %87 = vst [vmem:[#allocation7] sm:$0xff] %v86
    $region25: #{tpu_custom_call.1} parent=1 // pred_fallthru
      _
    %p88 = scmp.gt.s32.totalorder %s79, 2048
    // Predicated region
    $region26: #{tpu_custom_call.1} parent=1 // pred_check
      %p89 = pneg %p88
    $region27: #{tpu_custom_call.1} parent=1 // pred_check_branch
      %91 = sbr.rel (%p89) target = $region29
    $region28: #{tpu_custom_call.1} parent=1 // pred_region
      %v92 = vlaneseq
      %v93 = vshrl.u32 %v92, 7
      %v94 = vadd.s32 %v93, 8
      %v95 = vlaneseq
      %v96 = vand.u32 %v95, 127
      %v97 = vmul.u32 %v93, 128
      %v98 = vmul.u32 %v94, 128
      %v99 = vstv %s78
      %v100 = vadd.s32 %v99, %v97
      %v101 = vadd.s32 %v99, %v98
      %v102 = vadd.s32 %v100, %v96
      %v103 = vadd.s32 %v101, %v96
      %vm104 = vcmp.lt.s32.totalorder %v102, 2048
      %vm105 = vcmp.lt.s32.totalorder %v103, 2048
      %v106 = vsel %vm104, %v75, 0.0
      %v107 = vsel %vm105, %v76, 0.0
      %v108 = vld [vmem:[#allocation7] sm:$0xff]
      %v109 = vadd.f32 %v106, %v107
      %v110 = vadd.f32 %v108, %v109
      %111 = vst [vmem:[#allocation7] sm:$0xff] %v110
    $region29: #{tpu_custom_call.1} parent=1 // pred_fallthru
      _
    // Predicated region
    $region30: #{tpu_custom_call.1} parent=1 // pred_check
      _
    $region31: #{tpu_custom_call.1} parent=1 // pred_check_branch
      %113 = sbr.rel (0) target = $region33
    $region32: #{tpu_custom_call.1} parent=1 // pred_region
      %115 = vsyncadd [#allocation4], 0
      %s117 = sshll.u32 [#allocation7], 4
      %s118 = int_to_ptr.vmem [resolvable:$true] %s117
      %s119 = sshll.u32 %s2, 4
      %s120 = int_to_ptr.hbm [resolvable:$true] %s119
      %122 = dma.vmem_to_hbm [thread:$0]  %s118, 128, %s120, [#allocation4]
    $region33: #{tpu_custom_call.1} parent=1 // pred_fallthru
      _
    // Predicated region
    $region34: #{tpu_custom_call.1} parent=1 // pred_check
      _
    $region35: #{tpu_custom_call.1} parent=1 // pred_check_branch
      %124 = sbr.rel (0) target = $region37
    $region36: #{tpu_custom_call.1} parent=1 // pred_region
      %126 = dma.done [#allocation4], 128
    $region37: #{tpu_custom_call.1} parent=1 // pred_fallthru
      _
    %127 = vsyncpa [#allocation3], 1
    %128 = vsyncpa [#allocation6], 1
    %129 = vsyncpa [#allocation4], 1

</llo_original>
